<compile_context>
chip_gen: v7x
topology: tpu7x:2x2x1
jax: 0.10.0
libtpu: 0.0.40
codegen_flags: <defaults>
</compile_context>

<pallas_src>
import functools
import math

import jax
import jax.numpy as jnp
from jax.experimental import pallas as pl
from jax.experimental.pallas import tpu as pltpu

ALPHA = 2.1
OMEGA = 14.0
EPSILON = 1.0
THETA = 0.5

_LANE = 128
_W_CANDIDATES = (4096, 2048, 1024, 512, 256, 128)
_TARGET_BLOCK_BYTES = 2 * 1024 * 1024   # per input/output buffer per grid step
_MIN_GRID_STEPS = 8                     # >= 4 pipelined steps per TC on v7x
_FAST_PATH_ELEMS = 65536                # below this, dispatch overhead dominates
_VMEM_LIMIT_BYTES = 32 * 1024 * 1024    # safe on v5e/v6e (128 MiB) and v7x (64 MiB)


def _awl_kernel(yp_ref, y_ref, out_ref, *, alpha, omega, theta,
                inv_eps, log_ratio, omega_over_theta, eps_is_one):
    yp = yp_ref[...].astype(jnp.float32)
    yt = y_ref[...].astype(jnp.float32)

    a_minus_y = alpha - yt
    diff = jnp.abs(yt - yp)
    sel = diff < theta                       # case 1 (small residual) mask

    d = diff if eps_is_one else diff * inv_eps   # fold /eps at trace time if eps==1

    # Merged branches: one log, one exp, one log, one approx reciprocal (4 EUP).
    log_d = jnp.log(d)                       # -inf at diff==0 is benign (exp -> 0)
    z = a_minus_y * jnp.where(sel, log_d, log_ratio)
    p = jnp.exp(z)                           # (d)^(a-y) where sel, pow_t elsewhere
    one_plus = 1.0 + p
    L = omega * jnp.log(one_plus)            # loss1 where sel; omega*log(1+pow_t) else

    # 1/(1+p): approx EUP reciprocal + one Newton step (~1e-7 rel error).
    r = pl.reciprocal(one_plus, approx=True)
    r = r * (2.0 - one_plus * r)

    # A = (omega/theta) * (alpha-y) * pow_t / (1+pow_t); only used where ~sel.
    A = omega_over_theta * r * a_minus_y * p

    out = L + jnp.where(sel, 0.0, A * (diff - theta))
    out_ref[...] = out.astype(out_ref.dtype)


def _sublane_multiple(dtype):
    """Minimum sublane multiple: 8 for 4-byte, 16 for 2-byte, 32 for 1-byte dtypes."""
    itemsize = jnp.dtype(dtype).itemsize
    return max(8, 32 // max(1, itemsize))


def _choose_width(n, sub):
    """Widest lane-dense last dim dividing n that still leaves >= 8*sub rows."""
    widest = None
    for w in _W_CANDIDATES:
        if n % w == 0:
            if widest is None:
                widest = w
            if n // w >= _MIN_GRID_STEPS * sub:
                return w
    return widest  # caller guarantees n % 128 == 0, so never None


def _choose_block_rows(n_rows, width, itemsize, sub):
    """Rows per block: <= ~2 MiB/buffer, sublane-aligned, >= 8 grid steps if possible."""
    if n_rows <= sub:
        return n_rows                       # block == full (small) row dim is legal
    cap = max(sub, (_TARGET_BLOCK_BYTES // (width * itemsize)) // sub * sub)
    depth = max(sub, (n_rows // _MIN_GRID_STEPS) // sub * sub)
    return min(cap, depth)


def _awl_reference(y_pred, y, *, alpha=ALPHA, omega=OMEGA,
                   epsilon=EPSILON, theta=THETA):
    """Pure-JAX mirror of the PyTorch module (f32 compute, cast to input dtype)."""
    yp = y_pred.astype(jnp.float32)
    yt = y.astype(jnp.float32)
    diff = jnp.abs(yt - yp)
    pow_t = (theta / epsilon) ** (alpha - yt)
    A = (omega * (1.0 / (1.0 + pow_t)) * (alpha - yt)
         * (theta / epsilon) ** (alpha - yt - 1.0) / epsilon)
    C = theta * A - omega * jnp.log(1.0 + pow_t)
    loss1 = omega * jnp.log(1.0 + (diff / epsilon) ** (alpha - yt))
    loss2 = A * diff - C
    return jnp.where(diff < theta, loss1, loss2).astype(y_pred.dtype)


def adaptive_wing_loss(y_pred, y, *, alpha=ALPHA, omega=OMEGA,
                       epsilon=EPSILON, theta=THETA):
    """Elementwise Adaptive Wing Loss matrix (same shape/dtype as y_pred)."""
    assert y_pred.shape == y.shape, "y_pred and y must have the same shape"
    orig_shape = y_pred.shape
    out_dtype = y_pred.dtype
    n = math.prod(orig_shape) if orig_shape else 1

    # Fast path: tiny tensors (fixed pallas_call overhead dominates) and
    # non-multiple-of-128 element counts (avoids pad + slice extra HBM passes).
    # TODO(synk): a masked-tail in-kernel path could cover the large non-128
    # case in Pallas as well; the fused-XLA fallback is already single-pass.
    if n < _FAST_PATH_ELEMS or n % _LANE != 0:
        return _awl_reference(y_pred, y, alpha=alpha, omega=omega,
                              epsilon=epsilon, theta=theta)

    itemsize = jnp.dtype(out_dtype).itemsize
    sub = _sublane_multiple(out_dtype)
    width = _choose_width(n, sub)
    rows = n // width

    yp2d = jnp.ravel(y_pred).reshape(rows, width)
    y2d = jnp.ravel(y).reshape(rows, width)

    block_rows = _choose_block_rows(rows, width, itemsize, sub)
    grid = (pl.cdiv(rows, block_rows),)

    kernel = functools.partial(
        _awl_kernel,
        alpha=float(alpha),
        omega=float(omega),
        theta=float(theta),
        inv_eps=1.0 / float(epsilon),
        log_ratio=math.log(float(theta) / float(epsilon)),
        omega_over_theta=float(omega) / float(theta),
        eps_is_one=(float(epsilon) == 1.0),
    )

    out2d = pl.pallas_call(
        kernel,
        out_shape=jax.ShapeDtypeStruct((rows, width), out_dtype),
        grid_spec=pltpu.PrefetchScalarGridSpec(
            num_scalar_prefetch=0,
            grid=grid,
            in_specs=[
                pl.BlockSpec((block_rows, width), lambda i: (i, 0)),
                pl.BlockSpec((block_rows, width), lambda i: (i, 0)),
            ],
            out_specs=pl.BlockSpec((block_rows, width), lambda i: (i, 0)),
        ),
        compiler_params=pltpu.CompilerParams(
            dimension_semantics=("parallel",),
            vmem_limit_bytes=_VMEM_LIMIT_BYTES),
    )(yp2d, y2d)

    return out2d.reshape(orig_shape)


if __name__ == "__main__":
    key = jax.random.PRNGKey(0)
    k1, k2, k3, k4 = jax.random.split(key, 4)

    # Small NCHW demo shape (heatmap-style targets in [0,1]); hits the
    # fused-XLA fast path by design.
    shape_small = (2, 4, 16, 16)
    yp_s = jax.random.uniform(k1, shape_small, dtype=jnp.float32)
    y_s = jax.random.uniform(k2, shape_small, dtype=jnp.float32)
    out_s = adaptive_wing_loss(yp_s, y_s)
    jax.block_until_ready(out_s)
    ref_s = _awl_reference(yp_s, y_s)
    assert out_s.shape == shape_small and out_s.dtype == jnp.float32
    assert jnp.allclose(out_s, ref_s, rtol=1e-5, atol=1e-5)

    # Larger NCHW shape that exercises the Pallas kernel path
    # (131072 elems -> width 2048, 8 grid steps of (8, 2048) blocks).
    shape_big = (2, 4, 128, 128)
    yp_b = jax.random.uniform(k3, shape_big, dtype=jnp.float32)
    y_b = jax.random.uniform(k4, shape_big, dtype=jnp.float32)
    out_b = adaptive_wing_loss(yp_b, y_b)
    jax.block_until_ready(out_b)
    ref_b = _awl_reference(yp_b, y_b)
    assert out_b.shape == shape_big and out_b.dtype == jnp.float32
    assert jnp.allclose(out_b, ref_b, rtol=1e-5, atol=1e-5)

    print("KERNEL_OK")
</pallas_src>

<mosaic_0001>
module attributes {stable_mosaic.version = 11 : i64} {
  func.func @_awl_kernel(%arg0: i32, %arg1: memref<8x2048xf32, #tpu.memory_space<vmem>>, %arg2: memref<8x2048xf32, #tpu.memory_space<vmem>>, %arg3: memref<8x2048xf32, #tpu.memory_space<vmem>>) attributes {dimension_semantics = [#tpu.dimension_semantics<parallel>], iteration_bounds = array<i64: 8>, scalar_prefetch = 0 : i64, scratch_operands = 0 : i64, tpu.core_type = #tpu.core_type<tc>, window_params = [{transform_indices = @transform_0, window_bounds = array<i64: 8, 2048>}, {transform_indices = @transform_1, window_bounds = array<i64: 8, 2048>}, {transform_indices = @transform_2, window_bounds = array<i64: 8, 2048>}]} {
    %c0 = arith.constant 0 : index
    %c0_0 = arith.constant 0 : index
    %0 = vector.load %arg1[%c0, %c0_0] : memref<8x2048xf32, #tpu.memory_space<vmem>>, vector<8x2048xf32>
    %c0_1 = arith.constant 0 : index
    %c0_2 = arith.constant 0 : index
    %1 = vector.load %arg2[%c0_1, %c0_2] : memref<8x2048xf32, #tpu.memory_space<vmem>>, vector<8x2048xf32>
    %cst = arith.constant 2.100000e+00 : f32
    %2 = vector.broadcast %cst : f32 to vector<8x2048xf32>
    %3 = arith.subf %2, %1 : vector<8x2048xf32>
    %4 = arith.subf %1, %0 : vector<8x2048xf32>
    %5 = math.absf %4 : vector<8x2048xf32>
    %cst_3 = arith.constant 5.000000e-01 : f32
    %6 = vector.broadcast %cst_3 : f32 to vector<8x2048xf32>
    %7 = arith.cmpf olt, %5, %6 : vector<8x2048xf32>
    %8 = math.log %5 : vector<8x2048xf32>
    %cst_4 = arith.constant -0.693147182 : f32
    %9 = vector.broadcast %cst_4 : f32 to vector<8x2048xf32>
    %10 = arith.select %7, %8, %9 : vector<8x2048xi1>, vector<8x2048xf32>
    %11 = arith.mulf %3, %10 : vector<8x2048xf32>
    %12 = math.exp %11 : vector<8x2048xf32>
    %cst_5 = arith.constant 1.000000e+00 : f32
    %13 = vector.broadcast %cst_5 : f32 to vector<8x2048xf32>
    %14 = arith.addf %13, %12 : vector<8x2048xf32>
    %15 = math.log %14 : vector<8x2048xf32>
    %cst_6 = arith.constant 1.400000e+01 : f32
    %16 = vector.broadcast %cst_6 : f32 to vector<8x2048xf32>
    %17 = arith.mulf %16, %15 : vector<8x2048xf32>
    %18 = tpu.reciprocal %14 {approx = true} : vector<8x2048xf32> -> vector<8x2048xf32>
    %19 = arith.mulf %14, %18 : vector<8x2048xf32>
    %cst_7 = arith.constant 2.000000e+00 : f32
    %20 = vector.broadcast %cst_7 : f32 to vector<8x2048xf32>
    %21 = arith.subf %20, %19 : vector<8x2048xf32>
    %22 = arith.mulf %18, %21 : vector<8x2048xf32>
    %cst_8 = arith.constant 2.800000e+01 : f32
    %23 = vector.broadcast %cst_8 : f32 to vector<8x2048xf32>
    %24 = arith.mulf %23, %22 : vector<8x2048xf32>
    %25 = arith.mulf %24, %3 : vector<8x2048xf32>
    %26 = arith.mulf %25, %12 : vector<8x2048xf32>
    %cst_9 = arith.constant 5.000000e-01 : f32
    %27 = vector.broadcast %cst_9 : f32 to vector<8x2048xf32>
    %28 = arith.subf %5, %27 : vector<8x2048xf32>
    %29 = arith.mulf %26, %28 : vector<8x2048xf32>
    %cst_10 = arith.constant 0.000000e+00 : f32
    %30 = vector.broadcast %cst_10 : f32 to vector<8x2048xf32>
    %31 = arith.select %7, %30, %29 : vector<8x2048xi1>, vector<8x2048xf32>
    %32 = arith.addf %17, %31 : vector<8x2048xf32>
    %c0_11 = arith.constant 0 : index
    %c0_12 = arith.constant 0 : index
    %33 = vector.load %arg3[%c0_11, %c0_12] : memref<8x2048xf32, #tpu.memory_space<vmem>>, vector<8x2048xf32>
    tpu.vector_store %arg3[%c0_11, %c0_12], %32 {strides = array<i32>} : memref<8x2048xf32, #tpu.memory_space<vmem>>, vector<8x2048xf32>,
    return
  }
  func.func @transform_0(%arg0: i32) -> (i32, i32) {
    %c0_i32 = arith.constant 0 : i32
    %c0_i32_0 = arith.constant 0 : i32
    return %arg0, %c0_i32 : i32, i32
  }
  func.func @transform_1(%arg0: i32) -> (i32, i32) {
    %c0_i32 = arith.constant 0 : i32
    %c0_i32_0 = arith.constant 0 : i32
    return %arg0, %c0_i32 : i32, i32
  }
  func.func @transform_2(%arg0: i32) -> (i32, i32) {
    %c0_i32 = arith.constant 0 : i32
    %c0_i32_0 = arith.constant 0 : i32
    return %arg0, %c0_i32 : i32, i32
  }
}

</mosaic_0001>

<llo_original>
// kernel: tpu_custom_call.1
$region0: #{tpu_custom_call.1}
  #allocation0 [shape = 'u32[]', space=smem, size = 0x4, offset = 0x4, fixed_abs, tag = 'smem constant byte address 0x4 - core index']
  #allocation1 [shape = 'u32[144,128]{1,0:T(1,128)}', space=vmem, size = 0x12000, scoped, tag = 'internal scratch']
  %s0 = inlined_call_operand.hbm [shape: f32[64,2048], index: 0, kind: input, shape index: {}]
  %s1 = inlined_call_operand.hbm [shape: f32[64,2048], index: 1, kind: input, shape index: {}]
  %s2 = inlined_call_operand.hbm [shape: f32[64,2048], index: 2, kind: output, shape index: {}]
  %s3 = sld [smem:[#allocation0]]
  $region49: #{tpu_custom_call.1} parent=0
    _
  %s5 = ssub.s32 1, %s3
  %s6 = scalar_select 0, %s5, %s3
  $region1: #{tpu_custom_call.1} parent=0
    #allocation2 [shape = 'u8[131072]{0}', space=vmem, size = 0x20000, scoped, tag = 'input window, operand 0']
    #allocation3 [shape = 's32[2]{0}', space=sflag, size = 0x8, scoped, tag = 'scoped memory for tpu_custom_call.1']
    #allocation4 [shape = 's32[2]{0}', space=sflag, size = 0x8, scoped, tag = 'scoped memory for tpu_custom_call.1']
    #allocation5 [shape = 'u8[131072]{0}', space=vmem, size = 0x20000, scoped, tag = 'input window, operand 1']
    #allocation6 [shape = 's32[2]{0}', space=sflag, size = 0x8, scoped, tag = 'scoped memory for tpu_custom_call.1']
    #allocation7 [shape = 'u8[131072]{0}', space=vmem, size = 0x20000, scoped, tag = 'output window, operand 0']
    %7 = vsyncpa [#allocation3], 0
    %s8 = scalar_lea.sflag [#allocation3], 1
    %9 = vsyncpa %s8, 0
    %10 = vsyncpa [#allocation6], 0
    %s11 = scalar_lea.sflag [#allocation6], 1
    %12 = vsyncpa %s11, 0
    %13 = vsyncpa [#allocation4], 0
    %s14 = scalar_lea.sflag [#allocation4], 1
    %15 = vsyncpa %s14, 0
    loop: start=0, step=1, limit=10
    $region2: #{tpu_custom_call.1} parent=1 // loop_pre_header
      _
    $region3: #{tpu_custom_call.1} parent=1 // loop_header
      %s17 = sphi 0, %s21
      %p18 = scmp.ge.s32.totalorder %s17, 10
      %s27 = sphi 0, %s29
      %s30 = sphi 0, %s27
      %s31 = sphi 0, %s30
      %s47 = sphi 0, %s31
      %s53 = sphi 0, %s55
      %s56 = sphi 0, %s53
      %s57 = sphi 0, %s56
      %s73 = sphi 0, %s57
      %s79 = sphi 0, %s81
      %s82 = sphi 0, %s79
      %s83 = sphi 0, %s82
      %s99 = sphi 0, %s83
    $region4: #{tpu_custom_call.1} parent=1 // loop_header_branch
      %20 = sbr.rel (%p18) target = $region8
    $region5: #{tpu_custom_call.1} parent=1 // loop_body
      %s22 = ssub.s32 %s17, 1
      %s23 = ssub.s32 %s17, 2
      %s24 = sadd.s32 %s17, 1
      %s25 = ssub.s32 %s17, %s24
      %p26 = scmp.eq.s32.totalorder %s25, 0
      %s28 = sadd.s32 %s27, 1
      %s29 = scalar_select %p26, %s27, %s28
      %p32 = pneg %p26
      %p33 = scmp.eq.s32.totalorder %s17, 7
      %p34 = por %p32, %p33
      %p35 = scmp.ne.s32.totalorder %s27, %s30
      %p36 = scmp.eq.s32.totalorder %s17, 0
      %p37 = por %p35, %p36
      %p38 = scmp.ne.s32.totalorder %s27, %s30
      %p39 = scmp.eq.s32.totalorder %s22, 7
      %p40 = por %p38, %p39
      %p41 = scmp.ne.s32.totalorder %s30, %s31
      %p42 = scmp.eq.s32.totalorder %s22, 0
      %p43 = por %p41, %p42
      %p44 = scmp.ne.s32.totalorder %s30, %s31
      %p45 = scmp.eq.s32.totalorder %s23, 7
      %p46 = por %p44, %p45
      %p48 = scmp.ne.s32.totalorder %s31, %s47
      %p49 = scmp.eq.s32.totalorder %s23, 0
      %p50 = por %p48, %p49
      %s51 = ssub.s32 %s17, %s24
      %p52 = scmp.eq.s32.totalorder %s51, 0
      %s54 = sadd.s32 %s53, 1
      %s55 = scalar_select %p52, %s53, %s54
      %p58 = pneg %p52
      %p59 = scmp.eq.s32.totalorder %s17, 7
      %p60 = por %p58, %p59
      %p61 = scmp.ne.s32.totalorder %s53, %s56
      %p62 = scmp.eq.s32.totalorder %s17, 0
      %p63 = por %p61, %p62
      %p64 = scmp.ne.s32.totalorder %s53, %s56
      %p65 = scmp.eq.s32.totalorder %s22, 7
      %p66 = por %p64, %p65
      %p67 = scmp.ne.s32.totalorder %s56, %s57
      %p68 = scmp.eq.s32.totalorder %s22, 0
      %p69 = por %p67, %p68
      %p70 = scmp.ne.s32.totalorder %s56, %s57
      %p71 = scmp.eq.s32.totalorder %s23, 7
      %p72 = por %p70, %p71
      %p74 = scmp.ne.s32.totalorder %s57, %s73
      %p75 = scmp.eq.s32.totalorder %s23, 0
      %p76 = por %p74, %p75
      %s77 = ssub.s32 %s17, %s24
      %p78 = scmp.eq.s32.totalorder %s77, 0
      %s80 = sadd.s32 %s79, 1
      %s81 = scalar_select %p78, %s79, %s80
      %p84 = pneg %p78
      %p85 = scmp.eq.s32.totalorder %s17, 7
      %p86 = por %p84, %p85
      %p87 = scmp.ne.s32.totalorder %s79, %s82
      %p88 = scmp.eq.s32.totalorder %s17, 0
      %p89 = por %p87, %p88
      %p90 = scmp.ne.s32.totalorder %s79, %s82
      %p91 = scmp.eq.s32.totalorder %s22, 7
      %p92 = por %p90, %p91
      %p93 = scmp.ne.s32.totalorder %s82, %s83
      %p94 = scmp.eq.s32.totalorder %s22, 0
      %p95 = por %p93, %p94
      %p96 = scmp.ne.s32.totalorder %s82, %s83
      %p97 = scmp.eq.s32.totalorder %s23, 7
      %p98 = por %p96, %p97
      %p100 = scmp.ne.s32.totalorder %s83, %s99
      %p101 = scmp.eq.s32.totalorder %s23, 0
      %p102 = por %p100, %p101
      %p103 = scmp.le.s32.totalorder 1, %s17
      %p104 = scmp.lt.s32.totalorder %s17, 9
      %p105 = pnand %p103, %p104
      %p106 = pneg %p105
      // Predicated region
      $region9: #{tpu_custom_call.1} parent=5 // pred_check
        _
      $region10: #{tpu_custom_call.1} parent=5 // pred_check_branch
        %108 = sbr.rel (%p105) target = $region12
      $region11: #{tpu_custom_call.1} parent=5 // pred_region
        %s109 = ssub.s32 %s17, 1
      $region12: #{tpu_custom_call.1} parent=5 // pred_fallthru
        _
      %p110 = scmp.lt.s32.totalorder %s17, 8
      // Predicated region
      $region13: #{tpu_custom_call.1} parent=5 // pred_check
        %p111 = pneg %p110
      $region14: #{tpu_custom_call.1} parent=5 // pred_check_branch
        %113 = sbr.rel (%p111) target = $region16
      $region15: #{tpu_custom_call.1} parent=5 // pred_region
        // Predicated region
        $region17: #{tpu_custom_call.1} parent=15 // pred_check
          %p114 = pneg %p37
        $region18: #{tpu_custom_call.1} parent=15 // pred_check_branch
          %116 = sbr.rel (%p114) target = $region20
        $region19: #{tpu_custom_call.1} parent=15 // pred_region
          %s117 = sand.u32 %s27, 1
          %s118 = scalar_lea.sflag [#allocation3], %s117
          %s119 = sand.u32 %s27, 1
          %s120 = smul.addr %s119, 128
          %s121 = scalar_lea.vmem [#allocation2], %s120
          %s123 = ssub.s32 2048, 2048
          %124 = vsyncadd %s118, %s123
          %s125 = smul.addr %s17, 16
          %s126 = smul.addr %s125, 128
          %s127 = scalar_lea.hbm %s0, %s126
          %s129 = sshll.u32 %s121, 4
          %s130 = int_to_ptr.vmem [resolvable:$true] %s129
          %132 = dma.hbm_to_vmem [thread:$0]  %s127, 2048, %s130, %s118
        $region20: #{tpu_custom_call.1} parent=15 // pred_fallthru
          _
        // Predicated region
        $region21: #{tpu_custom_call.1} parent=15 // pred_check
          %p133 = pneg %p63
        $region22: #{tpu_custom_call.1} parent=15 // pred_check_branch
          %135 = sbr.rel (%p133) target = $region24
        $region23: #{tpu_custom_call.1} parent=15 // pred_region
          %s136 = sand.u32 %s53, 1
          %s137 = scalar_lea.sflag [#allocation6], %s136
          %s138 = sand.u32 %s53, 1
          %s139 = smul.addr %s138, 128
          %s140 = scalar_lea.vmem [#allocation5], %s139
          %s142 = ssub.s32 2048, 2048
          %143 = vsyncadd %s137, %s142
          %s144 = smul.addr %s17, 16
          %s145 = smul.addr %s144, 128
          %s146 = scalar_lea.hbm %s1, %s145
          %s148 = sshll.u32 %s140, 4
          %s149 = int_to_ptr.vmem [resolvable:$true] %s148
          %151 = dma.hbm_to_vmem [thread:$0]  %s146, 2048, %s149, %s137
        $region24: #{tpu_custom_call.1} parent=15 // pred_fallthru
          _
      $region16: #{tpu_custom_call.1} parent=5 // pred_fallthru
        _
      %p152 = scmp.le.s32.totalorder 1, %s17
      %p153 = scmp.lt.s32.totalorder %s17, 9
      %p154 = pnand %p152, %p153
      %p155 = pneg %p154
      // Predicated region
      $region25: #{tpu_custom_call.1} parent=5 // pred_check
        _
      $region26: #{tpu_custom_call.1} parent=5 // pred_check_branch
        %157 = sbr.rel (%p154) target = $region28
      $region27: #{tpu_custom_call.1} parent=5 // pred_region
        %s158 = ssub.s32 %s17, 1
        %s159 = sand.u32 %s30, 1
        %s160 = scalar_lea.sflag [#allocation3], %s159
        %s161 = sand.u32 %s30, 1
        %s162 = smul.addr %s161, 128
        %s163 = scalar_lea.vmem [#allocation2], %s162
        // Predicated region
        $region29: #{tpu_custom_call.1} parent=27 // pred_check
          %p164 = pneg %p43
        $region30: #{tpu_custom_call.1} parent=27 // pred_check_branch
          %166 = sbr.rel (%p164) target = $region32
        $region31: #{tpu_custom_call.1} parent=27 // pred_region
          %167 = dma.done %s160, 2048
        $region32: #{tpu_custom_call.1} parent=27 // pred_fallthru
          _
        %s168 = sand.u32 %s56, 1
        %s169 = scalar_lea.sflag [#allocation6], %s168
        %s170 = sand.u32 %s56, 1
        %s171 = smul.addr %s170, 128
        %s172 = scalar_lea.vmem [#allocation5], %s171
        // Predicated region
        $region33: #{tpu_custom_call.1} parent=27 // pred_check
          %p173 = pneg %p69
        $region34: #{tpu_custom_call.1} parent=27 // pred_check_branch
          %175 = sbr.rel (%p173) target = $region36
        $region35: #{tpu_custom_call.1} parent=27 // pred_region
          %176 = dma.done %s169, 2048
        $region36: #{tpu_custom_call.1} parent=27 // pred_fallthru
          _
        %s177 = sand.u32 %s30, 1
        %s178 = scalar_lea.sflag [#allocation3], %s177
        %s179 = sand.u32 %s30, 1
        %s180 = smul.addr %s179, 128
        %s181 = scalar_lea.vmem [#allocation2], %s180
        %p182 = pneg %p43
        %p183 = pneg %p40
        %s184 = sand.u32 %s56, 1
        %s185 = scalar_lea.sflag [#allocation6], %s184
        %s186 = sand.u32 %s56, 1
        %s187 = smul.addr %s186, 128
        %s188 = scalar_lea.vmem [#allocation5], %s187
        %p189 = pneg %p69
        %p190 = pneg %p66
        %p191 = pneg %p95
        %p192 = pneg %p92
        %s193 = sand.u32 %s82, 1
        %s194 = scalar_lea.sflag [#allocation4], %s193
        %s195 = sand.u32 %s82, 1
        %s196 = smul.addr %s195, 128
        %s197 = scalar_lea.vmem [#allocation7], %s196
        %v198 = vld [vmem:[%s163] sm:$0xff]
        %v199 = vld [vmem:[%s163 + $0x8] sm:$0xff]
        %v200 = vld [vmem:[%s163 + $0x10] sm:$0xff]
        %v201 = vld [vmem:[%s163 + $0x18] sm:$0xff]
        %v202 = vld [vmem:[%s163 + $0x20] sm:$0xff]
        %v203 = vld [vmem:[%s163 + $0x28] sm:$0xff]
        %v204 = vld [vmem:[%s163 + $0x30] sm:$0xff]
        %v205 = vld [vmem:[%s163 + $0x38] sm:$0xff]
        %v206 = vld [vmem:[%s163 + $0x40] sm:$0xff]
        %v207 = vld [vmem:[%s163 + $0x48] sm:$0xff]
        %v208 = vld [vmem:[%s163 + $0x50] sm:$0xff]
        %v209 = vld [vmem:[%s163 + $0x58] sm:$0xff]
        %v210 = vld [vmem:[%s163 + $0x60] sm:$0xff]
        %v211 = vld [vmem:[%s163 + $0x68] sm:$0xff]
        %v212 = vld [vmem:[%s163 + $0x70] sm:$0xff]
        %v213 = vld [vmem:[%s163 + $0x78] sm:$0xff]
        %v214 = vld [vmem:[%s172] sm:$0xff]
        %v215 = vld [vmem:[%s172 + $0x8] sm:$0xff]
        %v216 = vld [vmem:[%s172 + $0x10] sm:$0xff]
        %v217 = vld [vmem:[%s172 + $0x18] sm:$0xff]
        %v218 = vld [vmem:[%s172 + $0x20] sm:$0xff]
        %v219 = vld [vmem:[%s172 + $0x28] sm:$0xff]
        %v220 = vld [vmem:[%s172 + $0x30] sm:$0xff]
        %v221 = vld [vmem:[%s172 + $0x38] sm:$0xff]
        %v222 = vld [vmem:[%s172 + $0x40] sm:$0xff]
        %v223 = vld [vmem:[%s172 + $0x48] sm:$0xff]
        %v224 = vld [vmem:[%s172 + $0x50] sm:$0xff]
        %v225 = vld [vmem:[%s172 + $0x58] sm:$0xff]
        %v226 = vld [vmem:[%s172 + $0x60] sm:$0xff]
        %v227 = vld [vmem:[%s172 + $0x68] sm:$0xff]
        %v228 = vld [vmem:[%s172 + $0x70] sm:$0xff]
        %v229 = vld [vmem:[%s172 + $0x78] sm:$0xff]
        %v230 = vsub.f32 2.1, %v214
        %v231 = vsub.f32 2.1, %v215
        %v232 = vsub.f32 2.1, %v216
        %v233 = vsub.f32 2.1, %v217
        %v234 = vsub.f32 2.1, %v218
        %v235 = vsub.f32 2.1, %v219
        %v236 = vsub.f32 2.1, %v220
        %v237 = vsub.f32 2.1, %v221
        %v238 = vsub.f32 2.1, %v222
        %v239 = vsub.f32 2.1, %v223
        %v240 = vsub.f32 2.1, %v224
        %v241 = vsub.f32 2.1, %v225
        %v242 = vsub.f32 2.1, %v226
        %v243 = vsub.f32 2.1, %v227
        %v244 = vsub.f32 2.1, %v228
        %v245 = vsub.f32 2.1, %v229
        %v246 = vsub.f32 %v214, %v198
        %v247 = vsub.f32 %v215, %v199
        %v248 = vsub.f32 %v216, %v200
        %v249 = vsub.f32 %v217, %v201
        %v250 = vsub.f32 %v218, %v202
        %v251 = vsub.f32 %v219, %v203
        %v252 = vsub.f32 %v220, %v204
        %v253 = vsub.f32 %v221, %v205
        %v254 = vsub.f32 %v222, %v206
        %v255 = vsub.f32 %v223, %v207
        %v256 = vsub.f32 %v224, %v208
        %v257 = vsub.f32 %v225, %v209
        %v258 = vsub.f32 %v226, %v210
        %v259 = vsub.f32 %v227, %v211
        %v260 = vsub.f32 %v228, %v212
        %v261 = vsub.f32 %v229, %v213
        %v262 = vand.u32 2147483647, %v246
        %v263 = vand.u32 2147483647, %v247
        %v264 = vand.u32 2147483647, %v248
        %v265 = vand.u32 2147483647, %v249
        %v266 = vand.u32 2147483647, %v250
        %v267 = vand.u32 2147483647, %v251
        %v268 = vand.u32 2147483647, %v252
        %v269 = vand.u32 2147483647, %v253
        %v270 = vand.u32 2147483647, %v254
        %v271 = vand.u32 2147483647, %v255
        %v272 = vand.u32 2147483647, %v256
        %v273 = vand.u32 2147483647, %v257
        %v274 = vand.u32 2147483647, %v258
        %v275 = vand.u32 2147483647, %v259
        %v276 = vand.u32 2147483647, %v260
        %v277 = vand.u32 2147483647, %v261
        %vm278 = vcmp.lt.f32.partialorder %v262, 0.5
        %vm279 = vcmp.lt.f32.partialorder %v263, 0.5
        %vm280 = vcmp.lt.f32.partialorder %v264, 0.5
        %vm281 = vcmp.lt.f32.partialorder %v265, 0.5
        %vm282 = vcmp.lt.f32.partialorder %v266, 0.5
        %vm283 = vcmp.lt.f32.partialorder %v267, 0.5
        %vm284 = vcmp.lt.f32.partialorder %v268, 0.5
        %vm285 = vcmp.lt.f32.partialorder %v269, 0.5
        %vm286 = vcmp.lt.f32.partialorder %v270, 0.5
        %vm287 = vcmp.lt.f32.partialorder %v271, 0.5
        %vm288 = vcmp.lt.f32.partialorder %v272, 0.5
        %vm289 = vcmp.lt.f32.partialorder %v273, 0.5
        %vm290 = vcmp.lt.f32.partialorder %v274, 0.5
        %vm291 = vcmp.lt.f32.partialorder %v275, 0.5
        %vm292 = vcmp.lt.f32.partialorder %v276, 0.5
        %vm293 = vcmp.lt.f32.partialorder %v277, 0.5
        %v294 = vlog2.pop %v262
        %v295 = vmul.f32 %v294, 0.6931472
        %v296 = vlog2.pop %v263
        %v297 = vmul.f32 %v296, 0.6931472
        %v298 = vlog2.pop %v264
        %v299 = vmul.f32 %v298, 0.6931472
        %v300 = vlog2.pop %v265
        %v301 = vmul.f32 %v300, 0.6931472
        %v302 = vlog2.pop %v266
        %v303 = vmul.f32 %v302, 0.6931472
        %v304 = vlog2.pop %v267
        %v305 = vmul.f32 %v304, 0.6931472
        %v306 = vlog2.pop %v268
        %v307 = vmul.f32 %v306, 0.6931472
        %v308 = vlog2.pop %v269
        %v309 = vmul.f32 %v308, 0.6931472
        %v310 = vlog2.pop %v270
        %v311 = vmul.f32 %v310, 0.6931472
        %v312 = vlog2.pop %v271
        %v313 = vmul.f32 %v312, 0.6931472
        %v314 = vlog2.pop %v272
        %v315 = vmul.f32 %v314, 0.6931472
        %v316 = vlog2.pop %v273
        %v317 = vmul.f32 %v316, 0.6931472
        %v318 = vlog2.pop %v274
        %v319 = vmul.f32 %v318, 0.6931472
        %v320 = vlog2.pop %v275
        %v321 = vmul.f32 %v320, 0.6931472
        %v322 = vlog2.pop %v276
        %v323 = vmul.f32 %v322, 0.6931472
        %v324 = vlog2.pop %v277
        %v325 = vmul.f32 %v324, 0.6931472
        %v326 = vsel %vm278, %v295, -0.6931472
        %v327 = vsel %vm279, %v297, -0.6931472
        %v328 = vsel %vm280, %v299, -0.6931472
        %v329 = vsel %vm281, %v301, -0.6931472
        %v330 = vsel %vm282, %v303, -0.6931472
        %v331 = vsel %vm283, %v305, -0.6931472
        %v332 = vsel %vm284, %v307, -0.6931472
        %v333 = vsel %vm285, %v309, -0.6931472
        %v334 = vsel %vm286, %v311, -0.6931472
        %v335 = vsel %vm287, %v313, -0.6931472
        %v336 = vsel %vm288, %v315, -0.6931472
        %v337 = vsel %vm289, %v317, -0.6931472
        %v338 = vsel %vm290, %v319, -0.6931472
        %v339 = vsel %vm291, %v321, -0.6931472
        %v340 = vsel %vm292, %v323, -0.6931472
        %v341 = vsel %vm293, %v325, -0.6931472
        %v342 = vmul.f32 %v230, %v326
        %v343 = vmul.f32 %v231, %v327
        %v344 = vmul.f32 %v232, %v328
        %v345 = vmul.f32 %v233, %v329
        %v346 = vmul.f32 %v234, %v330
        %v347 = vmul.f32 %v235, %v331
        %v348 = vmul.f32 %v236, %v332
        %v349 = vmul.f32 %v237, %v333
        %v350 = vmul.f32 %v238, %v334
        %v351 = vmul.f32 %v239, %v335
        %v352 = vmul.f32 %v240, %v336
        %v353 = vmul.f32 %v241, %v337
        %v354 = vmul.f32 %v242, %v338
        %v355 = vmul.f32 %v243, %v339
        %v356 = vmul.f32 %v244, %v340
        %v357 = vmul.f32 %v245, %v341
        %v358 = vmul.f32 %v342, 1.442695
        %v359 = vpow.pop %v358
        %v360 = vmul.f32 %v343, 1.442695
        %v361 = vpow.pop %v360
        %v362 = vmul.f32 %v344, 1.442695
        %v363 = vpow.pop %v362
        %v364 = vmul.f32 %v345, 1.442695
        %v365 = vpow.pop %v364
        %v366 = vmul.f32 %v346, 1.442695
        %v367 = vpow.pop %v366
        %v368 = vmul.f32 %v347, 1.442695
        %v369 = vpow.pop %v368
        %v370 = vmul.f32 %v348, 1.442695
        %v371 = vpow.pop %v370
        %v372 = vmul.f32 %v349, 1.442695
        %v373 = vpow.pop %v372
        %v374 = vmul.f32 %v350, 1.442695
        %v375 = vpow.pop %v374
        %v376 = vmul.f32 %v351, 1.442695
        %v377 = vpow.pop %v376
        %v378 = vmul.f32 %v352, 1.442695
        %v379 = vpow.pop %v378
        %v380 = vmul.f32 %v353, 1.442695
        %v381 = vpow.pop %v380
        %v382 = vmul.f32 %v354, 1.442695
        %v383 = vpow.pop %v382
        %v384 = vmul.f32 %v355, 1.442695
        %v385 = vpow.pop %v384
        %v386 = vmul.f32 %v356, 1.442695
        %v387 = vpow.pop %v386
        %v388 = vmul.f32 %v357, 1.442695
        %v389 = vpow.pop %v388
        %v390 = vadd.f32 %v359, 1.0
        %v391 = vadd.f32 %v361, 1.0
        %v392 = vadd.f32 %v363, 1.0
        %v393 = vadd.f32 %v365, 1.0
        %v394 = vadd.f32 %v367, 1.0
        %v395 = vadd.f32 %v369, 1.0
        %v396 = vadd.f32 %v371, 1.0
        %v397 = vadd.f32 %v373, 1.0
        %v398 = vadd.f32 %v375, 1.0
        %v399 = vadd.f32 %v377, 1.0
        %v400 = vadd.f32 %v379, 1.0
        %v401 = vadd.f32 %v381, 1.0
        %v402 = vadd.f32 %v383, 1.0
        %v403 = vadd.f32 %v385, 1.0
        %v404 = vadd.f32 %v387, 1.0
        %v405 = vadd.f32 %v389, 1.0
        %v406 = vlog2.pop %v390
        %v407 = vmul.f32 %v406, 0.6931472
        %v408 = vlog2.pop %v391
        %v409 = vmul.f32 %v408, 0.6931472
        %v410 = vlog2.pop %v392
        %v411 = vmul.f32 %v410, 0.6931472
        %v412 = vlog2.pop %v393
        %v413 = vmul.f32 %v412, 0.6931472
        %v414 = vlog2.pop %v394
        %v415 = vmul.f32 %v414, 0.6931472
        %v416 = vlog2.pop %v395
        %v417 = vmul.f32 %v416, 0.6931472
        %v418 = vlog2.pop %v396
        %v419 = vmul.f32 %v418, 0.6931472
        %v420 = vlog2.pop %v397
        %v421 = vmul.f32 %v420, 0.6931472
        %v422 = vlog2.pop %v398
        %v423 = vmul.f32 %v422, 0.6931472
        %v424 = vlog2.pop %v399
        %v425 = vmul.f32 %v424, 0.6931472
        %v426 = vlog2.pop %v400
        %v427 = vmul.f32 %v426, 0.6931472
        %v428 = vlog2.pop %v401
        %v429 = vmul.f32 %v428, 0.6931472
        %v430 = vlog2.pop %v402
        %v431 = vmul.f32 %v430, 0.6931472
        %v432 = vlog2.pop %v403
        %v433 = vmul.f32 %v432, 0.6931472
        %v434 = vlog2.pop %v404
        %v435 = vmul.f32 %v434, 0.6931472
        %v436 = vlog2.pop %v405
        %v437 = vmul.f32 %v436, 0.6931472
        %v438 = vmul.f32 %v407, 14.0
        %v439 = vmul.f32 %v409, 14.0
        %v440 = vmul.f32 %v411, 14.0
        %v441 = vmul.f32 %v413, 14.0
        %v442 = vmul.f32 %v415, 14.0
        %v443 = vmul.f32 %v417, 14.0
        %v444 = vmul.f32 %v419, 14.0
        %v445 = vmul.f32 %v421, 14.0
        %v446 = vmul.f32 %v423, 14.0
        %v447 = vmul.f32 %v425, 14.0
        %v448 = vmul.f32 %v427, 14.0
        %v449 = vmul.f32 %v429, 14.0
        %v450 = vmul.f32 %v431, 14.0
        %v451 = vmul.f32 %v433, 14.0
        %v452 = vmul.f32 %v435, 14.0
        %v453 = vmul.f32 %v437, 14.0
        %v454 = vrcp.pop %v390
        %v455 = vrcp.pop %v391
        %v456 = vrcp.pop %v392
        %v457 = vrcp.pop %v393
        %v458 = vrcp.pop %v394
        %v459 = vrcp.pop %v395
        %v460 = vrcp.pop %v396
        %v461 = vrcp.pop %v397
        %v462 = vrcp.pop %v398
        %v463 = vrcp.pop %v399
        %v464 = vrcp.pop %v400
        %v465 = vrcp.pop %v401
        %v466 = vrcp.pop %v402
        %v467 = vrcp.pop %v403
        %v468 = vrcp.pop %v404
        %v469 = vrcp.pop %v405
        %v470 = vmul.f32 %v390, %v454
        %v471 = vmul.f32 %v391, %v455
        %v472 = vmul.f32 %v392, %v456
        %v473 = vmul.f32 %v393, %v457
        %v474 = vmul.f32 %v394, %v458
        %v475 = vmul.f32 %v395, %v459
        %v476 = vmul.f32 %v396, %v460
        %v477 = vmul.f32 %v397, %v461
        %v478 = vmul.f32 %v398, %v462
        %v479 = vmul.f32 %v399, %v463
        %v480 = vmul.f32 %v400, %v464
        %v481 = vmul.f32 %v401, %v465
        %v482 = vmul.f32 %v402, %v466
        %v483 = vmul.f32 %v403, %v467
        %v484 = vmul.f32 %v404, %v468
        %v485 = vmul.f32 %v405, %v469
        %v486 = vsub.f32 2.0, %v470
        %v487 = vsub.f32 2.0, %v471
        %v488 = vsub.f32 2.0, %v472
        %v489 = vsub.f32 2.0, %v473
        %v490 = vsub.f32 2.0, %v474
        %v491 = vsub.f32 2.0, %v475
        %v492 = vsub.f32 2.0, %v476
        %v493 = vsub.f32 2.0, %v477
        %v494 = vsub.f32 2.0, %v478
        %v495 = vsub.f32 2.0, %v479
        %v496 = vsub.f32 2.0, %v480
        %v497 = vsub.f32 2.0, %v481
        %v498 = vsub.f32 2.0, %v482
        %v499 = vsub.f32 2.0, %v483
        %v500 = vsub.f32 2.0, %v484
        %v501 = vsub.f32 2.0, %v485
        %v502 = vmul.f32 %v454, %v486
        %v503 = vmul.f32 %v455, %v487
        %v504 = vmul.f32 %v456, %v488
        %v505 = vmul.f32 %v457, %v489
        %v506 = vmul.f32 %v458, %v490
        %v507 = vmul.f32 %v459, %v491
        %v508 = vmul.f32 %v460, %v492
        %v509 = vmul.f32 %v461, %v493
        %v510 = vmul.f32 %v462, %v494
        %v511 = vmul.f32 %v463, %v495
        %v512 = vmul.f32 %v464, %v496
        %v513 = vmul.f32 %v465, %v497
        %v514 = vmul.f32 %v466, %v498
        %v515 = vmul.f32 %v467, %v499
        %v516 = vmul.f32 %v468, %v500
        %v517 = vmul.f32 %v469, %v501
        %v518 = vmul.f32 %v502, 28.0
        %v519 = vmul.f32 %v503, 28.0
        %v520 = vmul.f32 %v504, 28.0
        %v521 = vmul.f32 %v505, 28.0
        %v522 = vmul.f32 %v506, 28.0
        %v523 = vmul.f32 %v507, 28.0
        %v524 = vmul.f32 %v508, 28.0
        %v525 = vmul.f32 %v509, 28.0
        %v526 = vmul.f32 %v510, 28.0
        %v527 = vmul.f32 %v511, 28.0
        %v528 = vmul.f32 %v512, 28.0
        %v529 = vmul.f32 %v513, 28.0
        %v530 = vmul.f32 %v514, 28.0
        %v531 = vmul.f32 %v515, 28.0
        %v532 = vmul.f32 %v516, 28.0
        %v533 = vmul.f32 %v517, 28.0
        %v534 = vmul.f32 %v518, %v230
        %v535 = vmul.f32 %v519, %v231
        %v536 = vmul.f32 %v520, %v232
        %v537 = vmul.f32 %v521, %v233
        %v538 = vmul.f32 %v522, %v234
        %v539 = vmul.f32 %v523, %v235
        %v540 = vmul.f32 %v524, %v236
        %v541 = vmul.f32 %v525, %v237
        %v542 = vmul.f32 %v526, %v238
        %v543 = vmul.f32 %v527, %v239
        %v544 = vmul.f32 %v528, %v240
        %v545 = vmul.f32 %v529, %v241
        %v546 = vmul.f32 %v530, %v242
        %v547 = vmul.f32 %v531, %v243
        %v548 = vmul.f32 %v532, %v244
        %v549 = vmul.f32 %v533, %v245
        %v550 = vmul.f32 %v534, %v359
        %v551 = vmul.f32 %v535, %v361
        %v552 = vmul.f32 %v536, %v363
        %v553 = vmul.f32 %v537, %v365
        %v554 = vmul.f32 %v538, %v367
        %v555 = vmul.f32 %v539, %v369
        %v556 = vmul.f32 %v540, %v371
        %v557 = vmul.f32 %v541, %v373
        %v558 = vmul.f32 %v542, %v375
        %v559 = vmul.f32 %v543, %v377
        %v560 = vmul.f32 %v544, %v379
        %v561 = vmul.f32 %v545, %v381
        %v562 = vmul.f32 %v546, %v383
        %v563 = vmul.f32 %v547, %v385
        %v564 = vmul.f32 %v548, %v387
        %v565 = vmul.f32 %v549, %v389
        %v566 = vsub.f32 %v262, 0.5
        %v567 = vsub.f32 %v263, 0.5
        %v568 = vsub.f32 %v264, 0.5
        %v569 = vsub.f32 %v265, 0.5
        %v570 = vsub.f32 %v266, 0.5
        %v571 = vsub.f32 %v267, 0.5
        %v572 = vsub.f32 %v268, 0.5
        %v573 = vsub.f32 %v269, 0.5
        %v574 = vsub.f32 %v270, 0.5
        %v575 = vsub.f32 %v271, 0.5
        %v576 = vsub.f32 %v272, 0.5
        %v577 = vsub.f32 %v273, 0.5
        %v578 = vsub.f32 %v274, 0.5
        %v579 = vsub.f32 %v275, 0.5
        %v580 = vsub.f32 %v276, 0.5
        %v581 = vsub.f32 %v277, 0.5
        %v582 = vmul.f32 %v550, %v566
        %v583 = vmul.f32 %v551, %v567
        %v584 = vmul.f32 %v552, %v568
        %v585 = vmul.f32 %v553, %v569
        %v586 = vmul.f32 %v554, %v570
        %v587 = vmul.f32 %v555, %v571
        %v588 = vmul.f32 %v556, %v572
        %v589 = vmul.f32 %v557, %v573
        %v590 = vmul.f32 %v558, %v574
        %v591 = vmul.f32 %v559, %v575
        %v592 = vmul.f32 %v560, %v576
        %v593 = vmul.f32 %v561, %v577
        %v594 = vmul.f32 %v562, %v578
        %v595 = vmul.f32 %v563, %v579
        %v596 = vmul.f32 %v564, %v580
        %v597 = vmul.f32 %v565, %v581
        %v598 = vsel %vm278, 0.0, %v582
        %v599 = vsel %vm279, 0.0, %v583
        %v600 = vsel %vm280, 0.0, %v584
        %v601 = vsel %vm281, 0.0, %v585
        %v602 = vsel %vm282, 0.0, %v586
        %v603 = vsel %vm283, 0.0, %v587
        %v604 = vsel %vm284, 0.0, %v588
        %v605 = vsel %vm285, 0.0, %v589
        %v606 = vsel %vm286, 0.0, %v590
        %v607 = vsel %vm287, 0.0, %v591
        %v608 = vsel %vm288, 0.0, %v592
        %v609 = vsel %vm289, 0.0, %v593
        %v610 = vsel %vm290, 0.0, %v594
        %v611 = vsel %vm291, 0.0, %v595
        %v612 = vsel %vm292, 0.0, %v596
        %v613 = vsel %vm293, 0.0, %v597
        %v614 = vadd.f32 %v438, %v598
        %v615 = vadd.f32 %v439, %v599
        %v616 = vadd.f32 %v440, %v600
        %v617 = vadd.f32 %v441, %v601
        %v618 = vadd.f32 %v442, %v602
        %v619 = vadd.f32 %v443, %v603
        %v620 = vadd.f32 %v444, %v604
        %v621 = vadd.f32 %v445, %v605
        %v622 = vadd.f32 %v446, %v606
        %v623 = vadd.f32 %v447, %v607
        %v624 = vadd.f32 %v448, %v608
        %v625 = vadd.f32 %v449, %v609
        %v626 = vadd.f32 %v450, %v610
        %v627 = vadd.f32 %v451, %v611
        %v628 = vadd.f32 %v452, %v612
        %v629 = vadd.f32 %v453, %v613
        %630 = vst [vmem:[%s197] sm:$0xff] %v614
        %631 = vst [vmem:[%s197 + $0x8] sm:$0xff] %v615
        %632 = vst [vmem:[%s197 + $0x10] sm:$0xff] %v616
        %633 = vst [vmem:[%s197 + $0x18] sm:$0xff] %v617
        %634 = vst [vmem:[%s197 + $0x20] sm:$0xff] %v618
        %635 = vst [vmem:[%s197 + $0x28] sm:$0xff] %v619
        %636 = vst [vmem:[%s197 + $0x30] sm:$0xff] %v620
        %637 = vst [vmem:[%s197 + $0x38] sm:$0xff] %v621
        %638 = vst [vmem:[%s197 + $0x40] sm:$0xff] %v622
        %639 = vst [vmem:[%s197 + $0x48] sm:$0xff] %v623
        %640 = vst [vmem:[%s197 + $0x50] sm:$0xff] %v624
        %641 = vst [vmem:[%s197 + $0x58] sm:$0xff] %v625
        %642 = vst [vmem:[%s197 + $0x60] sm:$0xff] %v626
        %643 = vst [vmem:[%s197 + $0x68] sm:$0xff] %v627
        %644 = vst [vmem:[%s197 + $0x70] sm:$0xff] %v628
        %645 = vst [vmem:[%s197 + $0x78] sm:$0xff] %v629
        %s646 = sand.u32 %s82, 1
        %s647 = scalar_lea.sflag [#allocation4], %s646
        %s648 = sand.u32 %s82, 1
        %s649 = smul.addr %s648, 128
        %s650 = scalar_lea.vmem [#allocation7], %s649
        // Predicated region
        $region37: #{tpu_custom_call.1} parent=27 // pred_check
          %p651 = pneg %p92
        $region38: #{tpu_custom_call.1} parent=27 // pred_check_branch
          %653 = sbr.rel (%p651) target = $region40
        $region39: #{tpu_custom_call.1} parent=27 // pred_region
          %s655 = ssub.s32 2048, 2048
          %656 = vsyncadd %s647, %s655
          %s657 = smul.addr %s22, 16
          %s658 = smul.addr %s657, 128
          %s659 = scalar_lea.hbm %s2, %s658
          %s661 = sshll.u32 %s650, 4
          %s662 = int_to_ptr.vmem [resolvable:$true] %s661
          %664 = dma.vmem_to_hbm [thread:$0]  %s662, 2048, %s659, %s647
        $region40: #{tpu_custom_call.1} parent=27 // pred_fallthru
          _
      $region28: #{tpu_custom_call.1} parent=5 // pred_fallthru
        _
      %p665 = scmp.le.s32.totalorder 2, %s17
      // Predicated region
      $region41: #{tpu_custom_call.1} parent=5 // pred_check
        %p666 = pneg %p665
      $region42: #{tpu_custom_call.1} parent=5 // pred_check_branch
        %668 = sbr.rel (%p666) target = $region44
      $region43: #{tpu_custom_call.1} parent=5 // pred_region
        %s669 = ssub.s32 %s17, 2
        // Predicated region
        $region45: #{tpu_custom_call.1} parent=43 // pred_check
          %p670 = pneg %p98
        $region46: #{tpu_custom_call.1} parent=43 // pred_check_branch
          %672 = sbr.rel (%p670) target = $region48
        $region47: #{tpu_custom_call.1} parent=43 // pred_region
          %s673 = sand.u32 %s83, 1
          %s674 = scalar_lea.sflag [#allocation4], %s673
          %s675 = sand.u32 %s83, 1
          %s676 = smul.addr %s675, 128
          %s677 = scalar_lea.vmem [#allocation7], %s676
          %678 = dma.done %s674, 2048
        $region48: #{tpu_custom_call.1} parent=43 // pred_fallthru
          _
      $region44: #{tpu_custom_call.1} parent=5 // pred_fallthru
        _
    $region6: #{tpu_custom_call.1} parent=1 // loop_footer
      %s21 = sadd.s32 1, %s17
    $region7: #{tpu_custom_call.1} parent=1 // loop_footer_branch
      %16 = sbr.rel target = $region3
    $region8: #{tpu_custom_call.1} parent=1 // loop_exit
      _
    %679 = vsyncpa [#allocation3], 1
    %s680 = scalar_lea.sflag [#allocation3], 1
    %681 = vsyncpa %s680, 1
    %682 = vsyncpa [#allocation6], 1
    %s683 = scalar_lea.sflag [#allocation6], 1
    %684 = vsyncpa %s683, 1
    %685 = vsyncpa [#allocation4], 1
    %s686 = scalar_lea.sflag [#allocation4], 1
    %687 = vsyncpa %s686, 1

</llo_original>
